<compile_context>
chip_gen: v5e
topology: v5e:2x2
jax: 0.10.0
libtpu: 0.0.40
codegen_flags: <defaults>
</compile_context>

<pallas_src>
import jax
import jax.numpy as jnp
from jax import lax
from jax.experimental import pallas as pl
from jax.experimental.pallas import tpu as pltpu


def make_msa_kernel(num_heads: int, dim: int, compute_dtype=jnp.bfloat16):
    head_dim = dim // num_heads

    def msa_kernel(x_ref, wqkv_ref, wproj_ref, bproj_ref, o_ref):
        # x_ref:     (Bt, N, C)  compute_dtype  -- block of batch elements
        # wqkv_ref:  (C, 3C)     compute_dtype  -- (in, out); scale folded into Q cols
        # wproj_ref: (C, C)      compute_dtype  -- (in, out)
        # bproj_ref: (1, 1, C)   f32
        # o_ref:     (Bt, N, C)
        bt, n, c = x_ref.shape
        x = x_ref[...]

        # Fused QKV projection: bf16 operands, f32 accumulation, one wide
        # lane-dense (3C) output that keeps the MXU fed.
        qkv = lax.dot_general(
            x, wqkv_ref[...],
            dimension_numbers=(((2,), (0,)), ((), ())),
            preferred_element_type=jnp.float32,
        ).astype(compute_dtype)                                  # (Bt, N, 3C)

        acc = jnp.zeros((bt, n, c), jnp.float32)

        # num_heads is small & static -> unrolled Python loop.
        # TODO(synk): for large N, add a KV grid axis ("arbitrary") with
        # online-softmax (flash-style) accumulators so the (N, N) score tile
        # stays bounded in VMEM (matters on v7x's 64 MiB VMEM).
        for h in range(num_heads):
            q = qkv[:, :, 0 * dim + h * head_dim: 0 * dim + (h + 1) * head_dim]
            k = qkv[:, :, 1 * dim + h * head_dim: 1 * dim + (h + 1) * head_dim]
            v = qkv[:, :, 2 * dim + h * head_dim: 2 * dim + (h + 1) * head_dim]

            # Scores: contract head_dim of Q and K directly (no k.T).
            # Scale is already folded into the Q projection weights.
            s = lax.dot_general(
                q, k,
                dimension_numbers=(((2,), (2,)), ((0,), (0,))),
                preferred_element_type=jnp.float32,
            )                                                    # (Bt, N, N) f32

            # Numerically-stable softmax in f32; reciprocal on the EUP slot.
            m = jnp.max(s, axis=-1, keepdims=True)
            e = jnp.exp(s - m)
            p = e * pl.reciprocal(jnp.sum(e, axis=-1, keepdims=True), approx=True)

            # attn_drop is Dropout(p=0.0) -> identity; skipped.
            ctx = lax.dot_general(
                p.astype(compute_dtype), v,
                dimension_numbers=(((2,), (1,)), ((0,), (0,))),
                preferred_element_type=jnp.float32,
            )                                                    # (Bt, N, hd) f32

            # Fused head-concat + output projection (lane-dense accumulation).
            w_h = wproj_ref[h * head_dim:(h + 1) * head_dim, :]  # (hd, C)
            acc = acc + lax.dot_general(
                ctx.astype(compute_dtype), w_h,
                dimension_numbers=(((2,), (0,)), ((), ())),
                preferred_element_type=jnp.float32,
            )                                                    # (Bt, N, C)

        # proj bias; proj_drop is Dropout(p=0.0) -> identity.
        o_ref[...] = (acc + bproj_ref[...]).astype(o_ref.dtype)

    return msa_kernel


def _choose_batch_block(B: int, N: int, target_rows: int = 256) -> int:
    """Largest divisor Bt of B with Bt*N <= ~target_rows rows per grid step,
    while keeping >= 2 grid steps (when B >= 2) so both v7x TCs get work."""
    best = 1
    for bt in range(1, B + 1):
        if B % bt:
            continue
        if B >= 2 and B // bt < 2:
            continue
        if bt * N <= max(target_rows, N):
            best = bt
    return best


def msa_forward(x, qkv_weight, proj_weight, proj_bias, *, num_heads,
                batch_block=None, compute_dtype=jnp.bfloat16):
    """x: (B, N, C) f32. Weights follow PyTorch nn.Linear layout (out, in)."""
    B, N, C = x.shape
    assert C % num_heads == 0
    scale = (C // num_heads) ** -0.5

    # Pre-transpose the fused QKV weight to (in, out) and fold the softmax
    # scale into the Q columns (one-time, zero-runtime-cost transform).
    wqkv = qkv_weight.T.astype(jnp.float32)            # (C, 3C)
    wqkv = wqkv.at[:, :C].multiply(scale)
    wqkv = wqkv.astype(compute_dtype)
    wproj = proj_weight.T.astype(compute_dtype)        # (C, C)
    bproj = proj_bias.reshape(1, 1, C).astype(jnp.float32)
    xc = x.astype(compute_dtype)

    Bt = batch_block if batch_block is not None else _choose_batch_block(B, N)
    assert B % Bt == 0

    kernel = make_msa_kernel(num_heads, C, compute_dtype)

    return pl.pallas_call(
        kernel,
        out_shape=jax.ShapeDtypeStruct((B, N, C), x.dtype),
        grid_spec=pltpu.PrefetchScalarGridSpec(
            num_scalar_prefetch=0,
            grid=(B // Bt,),
            in_specs=[
                pl.BlockSpec((Bt, N, C), lambda b: (b, 0, 0)),
                # Constant index maps: the weights are DMA'd once and stay
                # resident in VMEM across every grid step.
                pl.BlockSpec((C, 3 * C), lambda b: (0, 0)),
                pl.BlockSpec((C, C), lambda b: (0, 0)),
                pl.BlockSpec((1, 1, C), lambda b: (0, 0, 0)),
            ],
            out_specs=pl.BlockSpec((Bt, N, C), lambda b: (b, 0, 0)),
        ),
        compiler_params=pltpu.CompilerParams(
            dimension_semantics=("parallel",),
            vmem_limit_bytes=64 * 1024 * 1024,
        ),
    )(xc, wqkv, wproj, bproj)


def msa_reference(x, qkv_weight, proj_weight, proj_bias, *, num_heads):
    """Pure-JAX f32 reference mirroring the PyTorch forward exactly."""
    B, N, C = x.shape
    head_dim = C // num_heads
    scale = head_dim ** -0.5
    qkv = x @ qkv_weight.T                                        # (B, N, 3C)
    qkv = qkv.reshape(B, N, 3, num_heads, head_dim)
    qkv = jnp.transpose(qkv, (2, 0, 3, 1, 4))                     # (3, B, H, N, hd)
    q, k, v = qkv[0], qkv[1], qkv[2]
    attn = (q @ jnp.swapaxes(k, -2, -1)) * scale                  # (B, H, N, N)
    attn = jax.nn.softmax(attn, axis=-1)
    out = attn @ v                                                # (B, H, N, hd)
    out = jnp.transpose(out, (0, 2, 1, 3)).reshape(B, N, C)
    out = out @ proj_weight.T + proj_bias
    return out


if __name__ == "__main__":
    # Small shapes consistent with the module: dim divisible by num_heads.
    B, N, C, H = 2, 16, 128, 4

    key = jax.random.PRNGKey(0)
    kx, kw1, kw2, kb = jax.random.split(key, 4)

    x = jax.random.normal(kx, (B, N, C), dtype=jnp.float32)
    # Deterministic synthetic parameters (PyTorch nn.Linear layout: (out, in)).
    qkv_weight = jax.random.normal(kw1, (3 * C, C), dtype=jnp.float32) * (C ** -0.5)
    proj_weight = jax.random.normal(kw2, (C, C), dtype=jnp.float32) * (C ** -0.5)
    proj_bias = jax.random.normal(kb, (C,), dtype=jnp.float32) * 0.02

    out = msa_forward(x, qkv_weight, proj_weight, proj_bias, num_heads=H)
    out = jax.block_until_ready(out)

    ref = msa_reference(x, qkv_weight, proj_weight, proj_bias, num_heads=H)
    assert out.shape == (B, N, C)
    # bf16 matmul inputs (f32 accumulation) + approx reciprocal -> looser tol.
    assert jnp.allclose(out, ref, atol=5e-2, rtol=5e-2), "mismatch vs reference"

    print("KERNEL_OK")
</pallas_src>

<mosaic_0001>
module attributes {stable_mosaic.version = 11 : i64} {
  func.func @msa_kernel(%arg0: i32, %arg1: memref<1x16x128xbf16, #tpu.memory_space<vmem>>, %arg2: memref<128x384xbf16, #tpu.memory_space<vmem>>, %arg3: memref<128x128xbf16, #tpu.memory_space<vmem>>, %arg4: memref<1x1x128xf32, #tpu.memory_space<vmem>>, %arg5: memref<1x16x128xf32, #tpu.memory_space<vmem>>) attributes {dimension_semantics = [#tpu.dimension_semantics<parallel>], iteration_bounds = array<i64: 2>, scalar_prefetch = 0 : i64, scratch_operands = 0 : i64, tpu.core_type = #tpu.core_type<tc>, window_params = [{transform_indices = @transform_0, window_bounds = array<i64: 1, 16, 128>}, {pipeline_mode = #tpu.pipeline_mode<synchronous>, transform_indices = @transform_1, window_bounds = array<i64: 128, 384>}, {pipeline_mode = #tpu.pipeline_mode<synchronous>, transform_indices = @transform_2, window_bounds = array<i64: 128, 128>}, {pipeline_mode = #tpu.pipeline_mode<synchronous>, transform_indices = @transform_3, window_bounds = array<i64: 1, 1, 128>}, {transform_indices = @transform_4, window_bounds = array<i64: 1, 16, 128>}]} {
    %c0 = arith.constant 0 : index
    %c0_0 = arith.constant 0 : index
    %c0_1 = arith.constant 0 : index
    %0 = vector.load %arg1[%c0, %c0_0, %c0_1] : memref<1x16x128xbf16, #tpu.memory_space<vmem>>, vector<1x16x128xbf16>
    %c0_2 = arith.constant 0 : index
    %c0_3 = arith.constant 0 : index
    %1 = vector.load %arg2[%c0_2, %c0_3] : memref<128x384xbf16, #tpu.memory_space<vmem>>, vector<128x384xbf16>
    %cst = arith.constant dense<0.000000e+00> : vector<1x16x384xf32>
    %2 = tpu.matmul %0, %1, %cst {dimension_numbers = #tpu.dot_dimension_numbers<[2], [0], [0, 1], [1], [0, 0, 0, 1, 1, 1], [], []>} : vector<1x16x128xbf16>, vector<128x384xbf16>, vector<1x16x384xf32> -> vector<1x16x384xf32>
    %3 = arith.truncf %2 : vector<1x16x384xf32> to vector<1x16x384xbf16>
    %cst_4 = arith.constant 0.000000e+00 : f32
    %4 = vector.broadcast %cst_4 : f32 to vector<1x16x128xf32>
    %5 = vector.extract_strided_slice %3 {offsets = [0, 0, 0], sizes = [1, 16, 32], strides = [1, 1, 1]} : vector<1x16x384xbf16> to vector<1x16x32xbf16>
    %6 = vector.extract_strided_slice %3 {offsets = [0, 0, 128], sizes = [1, 16, 32], strides = [1, 1, 1]} : vector<1x16x384xbf16> to vector<1x16x32xbf16>
    %7 = vector.extract_strided_slice %3 {offsets = [0, 0, 256], sizes = [1, 16, 32], strides = [1, 1, 1]} : vector<1x16x384xbf16> to vector<1x16x32xbf16>
    %cst_5 = arith.constant dense<0.000000e+00> : vector<1x16x16xf32>
    %8 = tpu.matmul %5, %6, %cst_5 {dimension_numbers = #tpu.dot_dimension_numbers<[2], [2], [1], [1], [0, 0, 0, 1, 1, 1], [0], [0]>} : vector<1x16x32xbf16>, vector<1x16x32xbf16>, vector<1x16x16xf32> -> vector<1x16x16xf32>
    %cst_6 = arith.constant dense<0xFF800000> : vector<1x16xf32>
    %9 = vector.multi_reduction <maximumf>, %8, %cst_6 [2] : vector<1x16x16xf32> to vector<1x16xf32>
    %10 = vector.shape_cast %9 : vector<1x16xf32> to vector<1x16x1xf32>
    %11 = vector.broadcast %10 : vector<1x16x1xf32> to vector<1x16x16xf32>
    %12 = arith.subf %8, %11 : vector<1x16x16xf32>
    %13 = math.exp %12 : vector<1x16x16xf32>
    %cst_7 = arith.constant dense<0.000000e+00> : vector<1x16xf32>
    %14 = vector.multi_reduction <add>, %13, %cst_7 [2] : vector<1x16x16xf32> to vector<1x16xf32>
    %15 = vector.shape_cast %14 : vector<1x16xf32> to vector<1x16x1xf32>
    %16 = tpu.reciprocal %15 {approx = true} : vector<1x16x1xf32> -> vector<1x16x1xf32>
    %17 = vector.broadcast %16 : vector<1x16x1xf32> to vector<1x16x16xf32>
    %18 = arith.mulf %13, %17 : vector<1x16x16xf32>
    %19 = arith.truncf %18 : vector<1x16x16xf32> to vector<1x16x16xbf16>
    %cst_8 = arith.constant dense<0.000000e+00> : vector<1x16x32xf32>
    %20 = tpu.matmul %19, %7, %cst_8 {dimension_numbers = #tpu.dot_dimension_numbers<[2], [1], [1], [2], [0, 0, 0, 1, 1, 2], [0], [0]>} : vector<1x16x16xbf16>, vector<1x16x32xbf16>, vector<1x16x32xf32> -> vector<1x16x32xf32>
    %c0_9 = arith.constant 0 : index
    %c0_10 = arith.constant 0 : index
    %21 = vector.load %arg3[%c0_9, %c0_10] : memref<128x128xbf16, #tpu.memory_space<vmem>>, vector<32x128xbf16>
    %22 = arith.truncf %20 : vector<1x16x32xf32> to vector<1x16x32xbf16>
    %cst_11 = arith.constant dense<0.000000e+00> : vector<1x16x128xf32>
    %23 = tpu.matmul %22, %21, %cst_11 {dimension_numbers = #tpu.dot_dimension_numbers<[2], [0], [0, 1], [1], [0, 0, 0, 1, 1, 1], [], []>} : vector<1x16x32xbf16>, vector<32x128xbf16>, vector<1x16x128xf32> -> vector<1x16x128xf32>
    %24 = arith.addf %4, %23 : vector<1x16x128xf32>
    %25 = vector.extract_strided_slice %3 {offsets = [0, 0, 32], sizes = [1, 16, 32], strides = [1, 1, 1]} : vector<1x16x384xbf16> to vector<1x16x32xbf16>
    %26 = vector.extract_strided_slice %3 {offsets = [0, 0, 160], sizes = [1, 16, 32], strides = [1, 1, 1]} : vector<1x16x384xbf16> to vector<1x16x32xbf16>
    %27 = vector.extract_strided_slice %3 {offsets = [0, 0, 288], sizes = [1, 16, 32], strides = [1, 1, 1]} : vector<1x16x384xbf16> to vector<1x16x32xbf16>
    %cst_12 = arith.constant dense<0.000000e+00> : vector<1x16x16xf32>
    %28 = tpu.matmul %25, %26, %cst_12 {dimension_numbers = #tpu.dot_dimension_numbers<[2], [2], [1], [1], [0, 0, 0, 1, 1, 1], [0], [0]>} : vector<1x16x32xbf16>, vector<1x16x32xbf16>, vector<1x16x16xf32> -> vector<1x16x16xf32>
    %cst_13 = arith.constant dense<0xFF800000> : vector<1x16xf32>
    %29 = vector.multi_reduction <maximumf>, %28, %cst_13 [2] : vector<1x16x16xf32> to vector<1x16xf32>
    %30 = vector.shape_cast %29 : vector<1x16xf32> to vector<1x16x1xf32>
    %31 = vector.broadcast %30 : vector<1x16x1xf32> to vector<1x16x16xf32>
    %32 = arith.subf %28, %31 : vector<1x16x16xf32>
    %33 = math.exp %32 : vector<1x16x16xf32>
    %cst_14 = arith.constant dense<0.000000e+00> : vector<1x16xf32>
    %34 = vector.multi_reduction <add>, %33, %cst_14 [2] : vector<1x16x16xf32> to vector<1x16xf32>
    %35 = vector.shape_cast %34 : vector<1x16xf32> to vector<1x16x1xf32>
    %36 = tpu.reciprocal %35 {approx = true} : vector<1x16x1xf32> -> vector<1x16x1xf32>
    %37 = vector.broadcast %36 : vector<1x16x1xf32> to vector<1x16x16xf32>
    %38 = arith.mulf %33, %37 : vector<1x16x16xf32>
    %39 = arith.truncf %38 : vector<1x16x16xf32> to vector<1x16x16xbf16>
    %cst_15 = arith.constant dense<0.000000e+00> : vector<1x16x32xf32>
    %40 = tpu.matmul %39, %27, %cst_15 {dimension_numbers = #tpu.dot_dimension_numbers<[2], [1], [1], [2], [0, 0, 0, 1, 1, 2], [0], [0]>} : vector<1x16x16xbf16>, vector<1x16x32xbf16>, vector<1x16x32xf32> -> vector<1x16x32xf32>
    %c32 = arith.constant 32 : index
    %c0_16 = arith.constant 0 : index
    %41 = vector.load %arg3[%c32, %c0_16] : memref<128x128xbf16, #tpu.memory_space<vmem>>, vector<32x128xbf16>
    %42 = arith.truncf %40 : vector<1x16x32xf32> to vector<1x16x32xbf16>
    %cst_17 = arith.constant dense<0.000000e+00> : vector<1x16x128xf32>
    %43 = tpu.matmul %42, %41, %cst_17 {dimension_numbers = #tpu.dot_dimension_numbers<[2], [0], [0, 1], [1], [0, 0, 0, 1, 1, 1], [], []>} : vector<1x16x32xbf16>, vector<32x128xbf16>, vector<1x16x128xf32> -> vector<1x16x128xf32>
    %44 = arith.addf %24, %43 : vector<1x16x128xf32>
    %45 = vector.extract_strided_slice %3 {offsets = [0, 0, 64], sizes = [1, 16, 32], strides = [1, 1, 1]} : vector<1x16x384xbf16> to vector<1x16x32xbf16>
    %46 = vector.extract_strided_slice %3 {offsets = [0, 0, 192], sizes = [1, 16, 32], strides = [1, 1, 1]} : vector<1x16x384xbf16> to vector<1x16x32xbf16>
    %47 = vector.extract_strided_slice %3 {offsets = [0, 0, 320], sizes = [1, 16, 32], strides = [1, 1, 1]} : vector<1x16x384xbf16> to vector<1x16x32xbf16>
    %cst_18 = arith.constant dense<0.000000e+00> : vector<1x16x16xf32>
    %48 = tpu.matmul %45, %46, %cst_18 {dimension_numbers = #tpu.dot_dimension_numbers<[2], [2], [1], [1], [0, 0, 0, 1, 1, 1], [0], [0]>} : vector<1x16x32xbf16>, vector<1x16x32xbf16>, vector<1x16x16xf32> -> vector<1x16x16xf32>
    %cst_19 = arith.constant dense<0xFF800000> : vector<1x16xf32>
    %49 = vector.multi_reduction <maximumf>, %48, %cst_19 [2] : vector<1x16x16xf32> to vector<1x16xf32>
    %50 = vector.shape_cast %49 : vector<1x16xf32> to vector<1x16x1xf32>
    %51 = vector.broadcast %50 : vector<1x16x1xf32> to vector<1x16x16xf32>
    %52 = arith.subf %48, %51 : vector<1x16x16xf32>
    %53 = math.exp %52 : vector<1x16x16xf32>
    %cst_20 = arith.constant dense<0.000000e+00> : vector<1x16xf32>
    %54 = vector.multi_reduction <add>, %53, %cst_20 [2] : vector<1x16x16xf32> to vector<1x16xf32>
    %55 = vector.shape_cast %54 : vector<1x16xf32> to vector<1x16x1xf32>
    %56 = tpu.reciprocal %55 {approx = true} : vector<1x16x1xf32> -> vector<1x16x1xf32>
    %57 = vector.broadcast %56 : vector<1x16x1xf32> to vector<1x16x16xf32>
    %58 = arith.mulf %53, %57 : vector<1x16x16xf32>
    %59 = arith.truncf %58 : vector<1x16x16xf32> to vector<1x16x16xbf16>
    %cst_21 = arith.constant dense<0.000000e+00> : vector<1x16x32xf32>
    %60 = tpu.matmul %59, %47, %cst_21 {dimension_numbers = #tpu.dot_dimension_numbers<[2], [1], [1], [2], [0, 0, 0, 1, 1, 2], [0], [0]>} : vector<1x16x16xbf16>, vector<1x16x32xbf16>, vector<1x16x32xf32> -> vector<1x16x32xf32>
    %c64 = arith.constant 64 : index
    %c0_22 = arith.constant 0 : index
    %61 = vector.load %arg3[%c64, %c0_22] : memref<128x128xbf16, #tpu.memory_space<vmem>>, vector<32x128xbf16>
    %62 = arith.truncf %60 : vector<1x16x32xf32> to vector<1x16x32xbf16>
    %cst_23 = arith.constant dense<0.000000e+00> : vector<1x16x128xf32>
    %63 = tpu.matmul %62, %61, %cst_23 {dimension_numbers = #tpu.dot_dimension_numbers<[2], [0], [0, 1], [1], [0, 0, 0, 1, 1, 1], [], []>} : vector<1x16x32xbf16>, vector<32x128xbf16>, vector<1x16x128xf32> -> vector<1x16x128xf32>
    %64 = arith.addf %44, %63 : vector<1x16x128xf32>
    %65 = vector.extract_strided_slice %3 {offsets = [0, 0, 96], sizes = [1, 16, 32], strides = [1, 1, 1]} : vector<1x16x384xbf16> to vector<1x16x32xbf16>
    %66 = vector.extract_strided_slice %3 {offsets = [0, 0, 224], sizes = [1, 16, 32], strides = [1, 1, 1]} : vector<1x16x384xbf16> to vector<1x16x32xbf16>
    %67 = vector.extract_strided_slice %3 {offsets = [0, 0, 352], sizes = [1, 16, 32], strides = [1, 1, 1]} : vector<1x16x384xbf16> to vector<1x16x32xbf16>
    %cst_24 = arith.constant dense<0.000000e+00> : vector<1x16x16xf32>
    %68 = tpu.matmul %65, %66, %cst_24 {dimension_numbers = #tpu.dot_dimension_numbers<[2], [2], [1], [1], [0, 0, 0, 1, 1, 1], [0], [0]>} : vector<1x16x32xbf16>, vector<1x16x32xbf16>, vector<1x16x16xf32> -> vector<1x16x16xf32>
    %cst_25 = arith.constant dense<0xFF800000> : vector<1x16xf32>
    %69 = vector.multi_reduction <maximumf>, %68, %cst_25 [2] : vector<1x16x16xf32> to vector<1x16xf32>
    %70 = vector.shape_cast %69 : vector<1x16xf32> to vector<1x16x1xf32>
    %71 = vector.broadcast %70 : vector<1x16x1xf32> to vector<1x16x16xf32>
    %72 = arith.subf %68, %71 : vector<1x16x16xf32>
    %73 = math.exp %72 : vector<1x16x16xf32>
    %cst_26 = arith.constant dense<0.000000e+00> : vector<1x16xf32>
    %74 = vector.multi_reduction <add>, %73, %cst_26 [2] : vector<1x16x16xf32> to vector<1x16xf32>
    %75 = vector.shape_cast %74 : vector<1x16xf32> to vector<1x16x1xf32>
    %76 = tpu.reciprocal %75 {approx = true} : vector<1x16x1xf32> -> vector<1x16x1xf32>
    %77 = vector.broadcast %76 : vector<1x16x1xf32> to vector<1x16x16xf32>
    %78 = arith.mulf %73, %77 : vector<1x16x16xf32>
    %79 = arith.truncf %78 : vector<1x16x16xf32> to vector<1x16x16xbf16>
    %cst_27 = arith.constant dense<0.000000e+00> : vector<1x16x32xf32>
    %80 = tpu.matmul %79, %67, %cst_27 {dimension_numbers = #tpu.dot_dimension_numbers<[2], [1], [1], [2], [0, 0, 0, 1, 1, 2], [0], [0]>} : vector<1x16x16xbf16>, vector<1x16x32xbf16>, vector<1x16x32xf32> -> vector<1x16x32xf32>
    %c96 = arith.constant 96 : index
    %c0_28 = arith.constant 0 : index
    %81 = vector.load %arg3[%c96, %c0_28] : memref<128x128xbf16, #tpu.memory_space<vmem>>, vector<32x128xbf16>
    %82 = arith.truncf %80 : vector<1x16x32xf32> to vector<1x16x32xbf16>
    %cst_29 = arith.constant dense<0.000000e+00> : vector<1x16x128xf32>
    %83 = tpu.matmul %82, %81, %cst_29 {dimension_numbers = #tpu.dot_dimension_numbers<[2], [0], [0, 1], [1], [0, 0, 0, 1, 1, 1], [], []>} : vector<1x16x32xbf16>, vector<32x128xbf16>, vector<1x16x128xf32> -> vector<1x16x128xf32>
    %84 = arith.addf %64, %83 : vector<1x16x128xf32>
    %c0_30 = arith.constant 0 : index
    %c0_31 = arith.constant 0 : index
    %c0_32 = arith.constant 0 : index
    %85 = vector.load %arg4[%c0_30, %c0_31, %c0_32] : memref<1x1x128xf32, #tpu.memory_space<vmem>>, vector<1x1x128xf32>
    %86 = vector.broadcast %85 : vector<1x1x128xf32> to vector<1x16x128xf32>
    %87 = arith.addf %84, %86 : vector<1x16x128xf32>
    %c0_33 = arith.constant 0 : index
    %c0_34 = arith.constant 0 : index
    %c0_35 = arith.constant 0 : index
    %88 = vector.load %arg5[%c0_33, %c0_34, %c0_35] : memref<1x16x128xf32, #tpu.memory_space<vmem>>, vector<1x16x128xf32>
    tpu.vector_store %arg5[%c0_33, %c0_34, %c0_35], %87 {strides = array<i32>} : memref<1x16x128xf32, #tpu.memory_space<vmem>>, vector<1x16x128xf32>,
    return
  }
  func.func @transform_0(%arg0: i32) -> (i32, i32, i32) {
    %c0_i32 = arith.constant 0 : i32
    %c0_i32_0 = arith.constant 0 : i32
    %c0_i32_1 = arith.constant 0 : i32
    return %arg0, %c0_i32, %c0_i32_0 : i32, i32, i32
  }
  func.func @transform_1(%arg0: i32) -> (i32, i32) {
    %c0_i32 = arith.constant 0 : i32
    %c0_i32_0 = arith.constant 0 : i32
    %c0_i32_1 = arith.constant 0 : i32
    return %c0_i32, %c0_i32_0 : i32, i32
  }
  func.func @transform_2(%arg0: i32) -> (i32, i32) {
    %c0_i32 = arith.constant 0 : i32
    %c0_i32_0 = arith.constant 0 : i32
    %c0_i32_1 = arith.constant 0 : i32
    return %c0_i32, %c0_i32_0 : i32, i32
  }
  func.func @transform_3(%arg0: i32) -> (i32, i32, i32) {
    %c0_i32 = arith.constant 0 : i32
    %c0_i32_0 = arith.constant 0 : i32
    %c0_i32_1 = arith.constant 0 : i32
    %c0_i32_2 = arith.constant 0 : i32
    return %c0_i32, %c0_i32_0, %c0_i32_1 : i32, i32, i32
  }
  func.func @transform_4(%arg0: i32) -> (i32, i32, i32) {
    %c0_i32 = arith.constant 0 : i32
    %c0_i32_0 = arith.constant 0 : i32
    %c0_i32_1 = arith.constant 0 : i32
    return %arg0, %c0_i32, %c0_i32_0 : i32, i32, i32
  }
}

</mosaic_0001>

<llo_original>
// kernel: tpu_custom_call.1
$region0: #{tpu_custom_call.1}
  #allocation0 [shape = 'u32[]', space=smem, size = 0x4, offset = 0x4, fixed_abs, tag = 'smem constant byte address 0x4 - core index']
  #allocation1 [shape = 'u32[72,128]{1,0:T(1,128)}', space=vmem, size = 0x9000, scoped, tag = 'internal scratch']
  %s0 = inlined_call_operand.hbm [shape: bf16[2,16,128], index: 0, kind: input, shape index: {}]
  %s1 = inlined_call_operand.hbm [shape: bf16[128,384], index: 1, kind: input, shape index: {}]
  %s2 = inlined_call_operand.hbm [shape: bf16[128,128], index: 2, kind: input, shape index: {}]
  %s3 = inlined_call_operand.vmem [shape: f32[1,1,128], index: 3, kind: input, shape index: {}]
  %s4 = inlined_call_operand.hbm [shape: f32[2,16,128], index: 4, kind: output, shape index: {}]
  %s5 = sld [smem:[#allocation0]]
  $region61: #{tpu_custom_call.1} parent=0
    _
  %s7 = ssub.s32 1, %s5
  %s8 = scalar_select 0, %s7, %s5
  $region1: #{tpu_custom_call.1} parent=0
    #allocation2 [shape = 'u8[8192]{0}', space=vmem, size = 0x2000, scoped, tag = 'input window, operand 0']
    #allocation3 [shape = 's32[2]{0}', space=sflag, size = 0x8, scoped, tag = 'scoped memory for tpu_custom_call.1']
    #allocation4 [shape = 's32[2]{0}', space=sflag, size = 0x8, scoped, tag = 'scoped memory for tpu_custom_call.1']
    #allocation5 [shape = 'u8[98304]{0}', space=vmem, size = 0x18000, scoped, tag = 'input window, operand 1, single buffered']
    #allocation6 [shape = 's32[1]{0}', space=sflag, size = 0x4, scoped, tag = 'scoped memory for tpu_custom_call.1']
    #allocation7 [shape = 'u8[32768]{0}', space=vmem, size = 0x8000, scoped, tag = 'input window, operand 2, single buffered']
    #allocation8 [shape = 'u8[16384]{0}', space=vmem, size = 0x4000, scoped, tag = 'output window, operand 0']
    %9 = vsyncpa [#allocation3], 0
    %s10 = scalar_lea.sflag [#allocation3], 1
    %11 = vsyncpa %s10, 0
    %12 = vsyncpa [#allocation6], 0
    %13 = vsyncpa [#allocation4], 0
    %s14 = scalar_lea.sflag [#allocation4], 1
    %15 = vsyncpa %s14, 0
    loop: start=0, step=1, limit=4
    $region2: #{tpu_custom_call.1} parent=1 // loop_pre_header
      _
    $region3: #{tpu_custom_call.1} parent=1 // loop_header
      %s17 = sphi 0, %s21
      %p18 = scmp.ge.s32.totalorder %s17, 4
      %s27 = sphi 0, %s29
      %s30 = sphi 0, %s27
      %s31 = sphi 0, %s30
      %s47 = sphi 0, %s31
      %s51 = sphi 0, %s51
      %s53 = sphi 0, %s51
      %s54 = sphi 0, %s53
      %s68 = sphi 0, %s54
      %s72 = sphi 0, %s72
      %s74 = sphi 0, %s72
      %s75 = sphi 0, %s74
      %s89 = sphi 0, %s75
      %s93 = sphi 0, %s93
      %s95 = sphi 0, %s93
      %s96 = sphi 0, %s95
      %s110 = sphi 0, %s96
      %s116 = sphi 0, %s118
      %s119 = sphi 0, %s116
      %s120 = sphi 0, %s119
      %s136 = sphi 0, %s120
    $region4: #{tpu_custom_call.1} parent=1 // loop_header_branch
      %20 = sbr.rel (%p18) target = $region8
    $region5: #{tpu_custom_call.1} parent=1 // loop_body
      %s22 = ssub.s32 %s17, 1
      %s23 = ssub.s32 %s17, 2
      %s24 = sadd.s32 %s17, 1
      %s25 = ssub.s32 %s17, %s24
      %p26 = scmp.eq.s32.totalorder %s25, 0
      %s28 = sadd.s32 %s27, 1
      %s29 = scalar_select %p26, %s27, %s28
      %p32 = pneg %p26
      %p33 = scmp.eq.s32.totalorder %s17, 1
      %p34 = por %p32, %p33
      %p35 = scmp.ne.s32.totalorder %s27, %s30
      %p36 = scmp.eq.s32.totalorder %s17, 0
      %p37 = por %p35, %p36
      %p38 = scmp.ne.s32.totalorder %s27, %s30
      %p39 = scmp.eq.s32.totalorder %s22, 1
      %p40 = por %p38, %p39
      %p41 = scmp.ne.s32.totalorder %s30, %s31
      %p42 = scmp.eq.s32.totalorder %s22, 0
      %p43 = por %p41, %p42
      %p44 = scmp.ne.s32.totalorder %s30, %s31
      %p45 = scmp.eq.s32.totalorder %s23, 1
      %p46 = por %p44, %p45
      %p48 = scmp.ne.s32.totalorder %s31, %s47
      %p49 = scmp.eq.s32.totalorder %s23, 0
      %p50 = por %p48, %p49
      %s52 = sadd.s32 %s51, 1
      %p55 = scmp.eq.s32.totalorder %s17, 1
      %p56 = scmp.ne.s32.totalorder %s51, %s53
      %p57 = scmp.eq.s32.totalorder %s17, 0
      %p58 = por %p56, %p57
      %p59 = scmp.ne.s32.totalorder %s51, %s53
      %p60 = scmp.eq.s32.totalorder %s22, 1
      %p61 = por %p59, %p60
      %p62 = scmp.ne.s32.totalorder %s53, %s54
      %p63 = scmp.eq.s32.totalorder %s22, 0
      %p64 = por %p62, %p63
      %p65 = scmp.ne.s32.totalorder %s53, %s54
      %p66 = scmp.eq.s32.totalorder %s23, 1
      %p67 = por %p65, %p66
      %p69 = scmp.ne.s32.totalorder %s54, %s68
      %p70 = scmp.eq.s32.totalorder %s23, 0
      %p71 = por %p69, %p70
      %s73 = sadd.s32 %s72, 1
      %p76 = scmp.eq.s32.totalorder %s17, 1
      %p77 = scmp.ne.s32.totalorder %s72, %s74
      %p78 = scmp.eq.s32.totalorder %s17, 0
      %p79 = por %p77, %p78
      %p80 = scmp.ne.s32.totalorder %s72, %s74
      %p81 = scmp.eq.s32.totalorder %s22, 1
      %p82 = por %p80, %p81
      %p83 = scmp.ne.s32.totalorder %s74, %s75
      %p84 = scmp.eq.s32.totalorder %s22, 0
      %p85 = por %p83, %p84
      %p86 = scmp.ne.s32.totalorder %s74, %s75
      %p87 = scmp.eq.s32.totalorder %s23, 1
      %p88 = por %p86, %p87
      %p90 = scmp.ne.s32.totalorder %s75, %s89
      %p91 = scmp.eq.s32.totalorder %s23, 0
      %p92 = por %p90, %p91
      %s94 = sadd.s32 %s93, 1
      %p97 = scmp.eq.s32.totalorder %s17, 1
      %p98 = scmp.ne.s32.totalorder %s93, %s95
      %p99 = scmp.eq.s32.totalorder %s17, 0
      %p100 = por %p98, %p99
      %p101 = scmp.ne.s32.totalorder %s93, %s95
      %p102 = scmp.eq.s32.totalorder %s22, 1
      %p103 = por %p101, %p102
      %p104 = scmp.ne.s32.totalorder %s95, %s96
      %p105 = scmp.eq.s32.totalorder %s22, 0
      %p106 = por %p104, %p105
      %p107 = scmp.ne.s32.totalorder %s95, %s96
      %p108 = scmp.eq.s32.totalorder %s23, 1
      %p109 = por %p107, %p108
      %p111 = scmp.ne.s32.totalorder %s96, %s110
      %p112 = scmp.eq.s32.totalorder %s23, 0
      %p113 = por %p111, %p112
      %s114 = ssub.s32 %s17, %s24
      %p115 = scmp.eq.s32.totalorder %s114, 0
      %s117 = sadd.s32 %s116, 1
      %s118 = scalar_select %p115, %s116, %s117
      %p121 = pneg %p115
      %p122 = scmp.eq.s32.totalorder %s17, 1
      %p123 = por %p121, %p122
      %p124 = scmp.ne.s32.totalorder %s116, %s119
      %p125 = scmp.eq.s32.totalorder %s17, 0
      %p126 = por %p124, %p125
      %p127 = scmp.ne.s32.totalorder %s116, %s119
      %p128 = scmp.eq.s32.totalorder %s22, 1
      %p129 = por %p127, %p128
      %p130 = scmp.ne.s32.totalorder %s119, %s120
      %p131 = scmp.eq.s32.totalorder %s22, 0
      %p132 = por %p130, %p131
      %p133 = scmp.ne.s32.totalorder %s119, %s120
      %p134 = scmp.eq.s32.totalorder %s23, 1
      %p135 = por %p133, %p134
      %p137 = scmp.ne.s32.totalorder %s120, %s136
      %p138 = scmp.eq.s32.totalorder %s23, 0
      %p139 = por %p137, %p138
      %p140 = scmp.le.s32.totalorder 1, %s17
      %p141 = scmp.lt.s32.totalorder %s17, 3
      %p142 = pnand %p140, %p141
      %p143 = pneg %p142
      // Predicated region
      $region9: #{tpu_custom_call.1} parent=5 // pred_check
        _
      $region10: #{tpu_custom_call.1} parent=5 // pred_check_branch
        %145 = sbr.rel (%p142) target = $region12
      $region11: #{tpu_custom_call.1} parent=5 // pred_region
        %s146 = ssub.s32 %s17, 1
        // Predicated region
        $region13: #{tpu_custom_call.1} parent=11 // pred_check
          %p147 = pneg %p64
        $region14: #{tpu_custom_call.1} parent=11 // pred_check_branch
          %149 = sbr.rel (%p147) target = $region16
        $region15: #{tpu_custom_call.1} parent=11 // pred_region
          %151 = vsyncadd [#allocation6], 0
          %s152 = sshll.u32 %s1, 4
          %s153 = int_to_ptr.hbm [resolvable:$true] %s152
          %s154 = sshll.u32 [#allocation5], 4
          %s155 = int_to_ptr.vmem [resolvable:$true] %s154
          %160 = dma.hbm_to_vmem [thread:$0]  %s153, 3072, %s155, [#allocation6], 192, 192, 12
        $region16: #{tpu_custom_call.1} parent=11 // pred_fallthru
          _
        // Predicated region
        $region17: #{tpu_custom_call.1} parent=11 // pred_check
          %p161 = pneg %p85
        $region18: #{tpu_custom_call.1} parent=11 // pred_check_branch
          %163 = sbr.rel (%p161) target = $region20
        $region19: #{tpu_custom_call.1} parent=11 // pred_region
          %165 = vsyncadd [#allocation6], 0
          %s166 = sshll.u32 %s2, 4
          %s167 = int_to_ptr.hbm [resolvable:$true] %s166
          %s168 = sshll.u32 [#allocation7], 4
          %s169 = int_to_ptr.vmem [resolvable:$true] %s168
          %174 = dma.hbm_to_vmem [thread:$0]  %s167, 1024, %s169, [#allocation6], 64, 64, 4
        $region20: #{tpu_custom_call.1} parent=11 // pred_fallthru
          _
        // Predicated region
        $region21: #{tpu_custom_call.1} parent=11 // pred_check
          %p175 = pneg %p106
        $region22: #{tpu_custom_call.1} parent=11 // pred_check_branch
          %177 = sbr.rel (%p175) target = $region24
        $region23: #{tpu_custom_call.1} parent=11 // pred_region
          _
        $region24: #{tpu_custom_call.1} parent=11 // pred_fallthru
          _
      $region12: #{tpu_custom_call.1} parent=5 // pred_fallthru
        _
      %p178 = scmp.lt.s32.totalorder %s17, 2
      // Predicated region
      $region25: #{tpu_custom_call.1} parent=5 // pred_check
        %p179 = pneg %p178
      $region26: #{tpu_custom_call.1} parent=5 // pred_check_branch
        %181 = sbr.rel (%p179) target = $region28
      $region27: #{tpu_custom_call.1} parent=5 // pred_region
        // Predicated region
        $region29: #{tpu_custom_call.1} parent=27 // pred_check
          %p182 = pneg %p37
        $region30: #{tpu_custom_call.1} parent=27 // pred_check_branch
          %184 = sbr.rel (%p182) target = $region32
        $region31: #{tpu_custom_call.1} parent=27 // pred_region
          %s185 = sand.u32 %s27, 1
          %s186 = scalar_lea.sflag [#allocation3], %s185
          %s187 = sand.u32 %s27, 1
          %s188 = smul.addr %s187, 8
          %s189 = scalar_lea.vmem [#allocation2], %s188
          %191 = vsyncadd %s186, 0
          %s192 = smul.addr %s17, 2
          %s193 = smul.addr %s192, 4
          %s194 = scalar_lea.hbm %s0, %s193
          %s195 = sshll.u32 %s194, 4
          %s196 = int_to_ptr.hbm [resolvable:$true] %s195
          %s197 = sshll.u32 %s189, 4
          %s198 = int_to_ptr.vmem [resolvable:$true] %s197
          %203 = dma.hbm_to_vmem [thread:$0]  %s196, 128, %s198, %s186, 64, 64, 4
        $region32: #{tpu_custom_call.1} parent=27 // pred_fallthru
          _
      $region28: #{tpu_custom_call.1} parent=5 // pred_fallthru
        _
      %p204 = scmp.le.s32.totalorder 1, %s17
      %p205 = scmp.lt.s32.totalorder %s17, 3
      %p206 = pnand %p204, %p205
      %p207 = pneg %p206
      // Predicated region
      $region33: #{tpu_custom_call.1} parent=5 // pred_check
        _
      $region34: #{tpu_custom_call.1} parent=5 // pred_check_branch
        %209 = sbr.rel (%p206) target = $region36
      $region35: #{tpu_custom_call.1} parent=5 // pred_region
        %s210 = ssub.s32 %s17, 1
        %s211 = sand.u32 %s30, 1
        %s212 = scalar_lea.sflag [#allocation3], %s211
        %s213 = sand.u32 %s30, 1
        %s214 = smul.addr %s213, 8
        %s215 = scalar_lea.vmem [#allocation2], %s214
        // Predicated region
        $region37: #{tpu_custom_call.1} parent=35 // pred_check
          %p216 = pneg %p43
        $region38: #{tpu_custom_call.1} parent=35 // pred_check_branch
          %218 = sbr.rel (%p216) target = $region40
        $region39: #{tpu_custom_call.1} parent=35 // pred_region
          %220 = dma.done %s212, 128
        $region40: #{tpu_custom_call.1} parent=35 // pred_fallthru
          _
        // Predicated region
        $region41: #{tpu_custom_call.1} parent=35 // pred_check
          %p221 = pneg %p64
        $region42: #{tpu_custom_call.1} parent=35 // pred_check_branch
          %223 = sbr.rel (%p221) target = $region44
        $region43: #{tpu_custom_call.1} parent=35 // pred_region
          %225 = dma.done [#allocation6], 3072
        $region44: #{tpu_custom_call.1} parent=35 // pred_fallthru
          _
        // Predicated region
        $region45: #{tpu_custom_call.1} parent=35 // pred_check
          %p226 = pneg %p85
        $region46: #{tpu_custom_call.1} parent=35 // pred_check_branch
          %228 = sbr.rel (%p226) target = $region48
        $region47: #{tpu_custom_call.1} parent=35 // pred_region
          %230 = dma.done [#allocation6], 1024
        $region48: #{tpu_custom_call.1} parent=35 // pred_fallthru
          _
        %s231 = sand.u32 %s30, 1
        %s232 = scalar_lea.sflag [#allocation3], %s231
        %s233 = sand.u32 %s30, 1
        %s234 = smul.addr %s233, 8
        %s235 = scalar_lea.vmem [#allocation2], %s234
        %p236 = pneg %p43
        %p237 = pneg %p40
        %p238 = pneg %p64
        %p239 = pneg %p61
        %p240 = pneg %p85
        %p241 = pneg %p82
        %p242 = pneg %p106
        %p243 = pneg %p103
        %p244 = pneg %p132
        %p245 = pneg %p129
        %s246 = sand.u32 %s119, 1
        %s247 = scalar_lea.sflag [#allocation4], %s246
        %s248 = sand.u32 %s119, 1
        %s249 = smul.addr %s248, 16
        %s250 = scalar_lea.vmem [#allocation8], %s249
        %v252 = vld [vmem:[%s215] sm:$0xf]
        %v253 = vld [vmem:[%s215 + $0x4] sm:$0xf]
        %v254 = vld [vmem:[#allocation5] sm:$0xff]
        %v255 = vld [vmem:[#allocation5 + $0x8] sm:$0xf]
        %v256 = vld [vmem:[#allocation5 + $0xc] sm:$0xff]
        %v257 = vld [vmem:[#allocation5 + $0x14] sm:$0xf]
        %v258 = vld [vmem:[#allocation5 + $0x18] sm:$0xff]
        %v259 = vld [vmem:[#allocation5 + $0x20] sm:$0xf]
        %v260 = vld [vmem:[#allocation5 + $0x24] sm:$0xff]
        %v261 = vld [vmem:[#allocation5 + $0x2c] sm:$0xf]
        %v262 = vld [vmem:[#allocation5 + $0x30] sm:$0xff]
        %v263 = vld [vmem:[#allocation5 + $0x38] sm:$0xf]
        %v264 = vld [vmem:[#allocation5 + $0x3c] sm:$0xff]
        %v265 = vld [vmem:[#allocation5 + $0x44] sm:$0xf]
        %v266 = vld [vmem:[#allocation5 + $0x48] sm:$0xff]
        %v267 = vld [vmem:[#allocation5 + $0x50] sm:$0xf]
        %v268 = vld [vmem:[#allocation5 + $0x54] sm:$0xff]
        %v269 = vld [vmem:[#allocation5 + $0x5c] sm:$0xf]
        %v270 = vld [vmem:[#allocation5 + $0x60] sm:$0xff]
        %v271 = vld [vmem:[#allocation5 + $0x68] sm:$0xf]
        %v272 = vld [vmem:[#allocation5 + $0x6c] sm:$0xff]
        %v273 = vld [vmem:[#allocation5 + $0x74] sm:$0xf]
        %v274 = vld [vmem:[#allocation5 + $0x78] sm:$0xff]
        %v275 = vld [vmem:[#allocation5 + $0x80] sm:$0xf]
        %v276 = vld [vmem:[#allocation5 + $0x84] sm:$0xff]
        %v277 = vld [vmem:[#allocation5 + $0x8c] sm:$0xf]
        %v278 = vld [vmem:[#allocation5 + $0x90] sm:$0xff]
        %v279 = vld [vmem:[#allocation5 + $0x98] sm:$0xf]
        %v280 = vld [vmem:[#allocation5 + $0x9c] sm:$0xff]
        %v281 = vld [vmem:[#allocation5 + $0xa4] sm:$0xf]
        %v282 = vld [vmem:[#allocation5 + $0xa8] sm:$0xff]
        %v283 = vld [vmem:[#allocation5 + $0xb0] sm:$0xf]
        %v284 = vld [vmem:[#allocation5 + $0xb4] sm:$0xff]
        %v285 = vld [vmem:[#allocation5 + $0xbc] sm:$0xf]
        %v288 = vunpack.c.l.b16 %v252
        %v289 = vunpack.c.l.b16 %v253
        %v290 = vpack.c.b16 %v289, %v288
        %v324 = vunpack.c.l.b16 %v254
        %v325 = vunpack.c.h.b16 %v254
        %v326 = vunpack.c.l.b16 %v255
        %v327 = vunpack.c.l.b16 %v256
        %v328 = vunpack.c.h.b16 %v256
        %v329 = vunpack.c.l.b16 %v257
        %v330 = vunpack.c.l.b16 %v258
        %v331 = vunpack.c.h.b16 %v258
        %v332 = vunpack.c.l.b16 %v259
        %v333 = vunpack.c.l.b16 %v260
        %v334 = vunpack.c.h.b16 %v260
        %v335 = vunpack.c.l.b16 %v261
        %v336 = vunpack.c.l.b16 %v262
        %v337 = vunpack.c.h.b16 %v262
        %v338 = vunpack.c.l.b16 %v263
        %v339 = vunpack.c.l.b16 %v264
        %v340 = vunpack.c.h.b16 %v264
        %v341 = vunpack.c.l.b16 %v265
        %v342 = vunpack.c.l.b16 %v266
        %v343 = vunpack.c.h.b16 %v266
        %v344 = vunpack.c.l.b16 %v267
        %v345 = vunpack.c.l.b16 %v268
        %v346 = vunpack.c.h.b16 %v268
        %v347 = vunpack.c.l.b16 %v269
        %v348 = vunpack.c.l.b16 %v270
        %v349 = vunpack.c.h.b16 %v270
        %v350 = vunpack.c.l.b16 %v271
        %v351 = vunpack.c.l.b16 %v272
        %v352 = vunpack.c.h.b16 %v272
        %v353 = vunpack.c.l.b16 %v273
        %v354 = vunpack.c.l.b16 %v274
        %v355 = vunpack.c.h.b16 %v274
        %v356 = vunpack.c.l.b16 %v275
        %v357 = vunpack.c.l.b16 %v276
        %v358 = vunpack.c.h.b16 %v276
        %v359 = vunpack.c.l.b16 %v277
        %v360 = vunpack.c.l.b16 %v278
        %v361 = vunpack.c.h.b16 %v278
        %v362 = vunpack.c.l.b16 %v279
        %v363 = vunpack.c.l.b16 %v280
        %v364 = vunpack.c.h.b16 %v280
        %v365 = vunpack.c.l.b16 %v281
        %v366 = vunpack.c.l.b16 %v282
        %v367 = vunpack.c.h.b16 %v282
        %v368 = vunpack.c.l.b16 %v283
        %v369 = vunpack.c.l.b16 %v284
        %v370 = vunpack.c.h.b16 %v284
        %v371 = vunpack.c.l.b16 %v285
        %v372 = vpack.c.b16 %v327, %v324
        %v373 = vpack.c.b16 %v328, %v325
        %v374 = vpack.c.b16 %v329, %v326
        %v375 = vpack.c.b16 %v333, %v330
        %v376 = vpack.c.b16 %v334, %v331
        %v377 = vpack.c.b16 %v335, %v332
        %v378 = vpack.c.b16 %v339, %v336
        %v379 = vpack.c.b16 %v340, %v337
        %v380 = vpack.c.b16 %v341, %v338
        %v381 = vpack.c.b16 %v345, %v342
        %v382 = vpack.c.b16 %v346, %v343
        %v383 = vpack.c.b16 %v347, %v344
        %v384 = vpack.c.b16 %v351, %v348
        %v385 = vpack.c.b16 %v352, %v349
        %v386 = vpack.c.b16 %v353, %v350
        %v387 = vpack.c.b16 %v357, %v354
        %v388 = vpack.c.b16 %v358, %v355
        %v389 = vpack.c.b16 %v359, %v356
        %v390 = vpack.c.b16 %v363, %v360
        %v391 = vpack.c.b16 %v364, %v361
        %v392 = vpack.c.b16 %v365, %v362
        %v393 = vpack.c.b16 %v369, %v366
        %v394 = vpack.c.b16 %v370, %v367
        %v395 = vpack.c.b16 %v371, %v368
        %420 = vmatpush.bf16.msra.mxu0 %v393
        %421 = vmatpush.bf16.msra.mxu0 %v390
        %422 = vmatpush.bf16.msra.mxu0 %v387
        %423 = vmatpush.bf16.msra.mxu0 %v384
        %424 = vmatpush.bf16.msra.mxu0 %v381
        %425 = vmatpush.bf16.msra.mxu0 %v378
        %426 = vmatpush.bf16.msra.mxu0 %v375
        %427 = vmatpush.bf16.msra.mxu0 %v372
        %428 = vmatmul.bf16.gmra.mxu0 %v290
        %v429 = vpop.f32.mrf.mxu0
        %v430 = vadd.f32 0.0, %v429
        %v431 = vpop.f32.mrf.mxu0
        %v432 = vadd.f32 0.0, %v431
        %433 = vdwg.mxu0
        %434 = vmatpush.bf16.msra.mxu0 %v394
        %435 = vmatpush.bf16.msra.mxu0 %v391
        %436 = vmatpush.bf16.msra.mxu0 %v388
        %437 = vmatpush.bf16.msra.mxu0 %v385
        %438 = vmatpush.bf16.msra.mxu0 %v382
        %439 = vmatpush.bf16.msra.mxu0 %v379
        %440 = vmatpush.bf16.msra.mxu0 %v376
        %441 = vmatpush.bf16.msra.mxu0 %v373
        %442 = vmatmul.bf16.gmra.mxu0 %v290
        %v443 = vpop.f32.mrf.mxu0
        %v444 = vadd.f32 0.0, %v443
        %v445 = vpop.f32.mrf.mxu0
        %v446 = vadd.f32 0.0, %v445
        %447 = vdwg.mxu0
        %448 = vmatpush.bf16.msra.mxu0 %v395
        %449 = vmatpush.bf16.msra.mxu0 %v392
        %450 = vmatpush.bf16.msra.mxu0 %v389
        %451 = vmatpush.bf16.msra.mxu0 %v386
        %452 = vmatpush.bf16.msra.mxu0 %v383
        %453 = vmatpush.bf16.msra.mxu0 %v380
        %454 = vmatpush.bf16.msra.mxu0 %v377
        %455 = vmatpush.bf16.msra.mxu0 %v374
        %456 = vmatmul.bf16.gmra.mxu0 %v290
        %v457 = vpop.f32.mrf.mxu0
        %v458 = vadd.f32 0.0, %v457
        %v459 = vpop.f32.mrf.mxu0
        %v460 = vadd.f32 0.0, %v459
        %461 = vdwg.mxu0
        %v462 = vpack.c.bf16 %v444, %v430
        %v463 = vpack.c.bf16 %v458, %v458
        %v464 = vpack.c.bf16 %v446, %v432
        %v465 = vpack.c.bf16 %v460, %v460
        %v468 = vrot.slane %v462, 4
        %v469 = vrot.slane %v464, 4
        %v470 = vunpack.c.l.b16 %v462
        %v471 = vunpack.c.l.b16 %v464
        %v472 = vpack.c.b16 %v471, %v470
        %v473 = vunpack.c.l.b16 %v468
        %v474 = vunpack.c.l.b16 %v469
        %v475 = vpack.c.b16 %v474, %v473
        %vm476 = vcmask 261120
        %v478 = vsel %vm476, %v472, 0
        %v481 = vsel %vm476, %v475, 0
        %483 = vmatpush.bf16.xpose.msra.mxu0 0
        %484 = vmatpush.bf16.xpose.msra.mxu0 0
        %485 = vmatpush.bf16.xpose.msra.mxu0 0
        %486 = vmatpush.bf16.xpose.msra.mxu0 0
        %487 = vmatpush.bf16.xpose.msra.mxu0 0
        %488 = vmatpush.bf16.xpose.msra.mxu0 0
        %489 = vmatpush.bf16.xpose.msra.mxu0 0
        %490 = vmatpush.bf16.xpose.msra.mxu0 %v481
        %491 = vmatmul.bf16.gmra.mxu0 %v478
        %v492 = vpop.f32.mrf.mxu0
        %v493 = vadd.f32 0.0, %v492
        %v494 = vpop.f32.mrf.mxu0
        %v495 = vadd.f32 0.0, %v494
        %496 = vdwg.mxu0
        %vm497 = vcmask 130048
        %v498 = vsel %vm497, %v493, -inf
        %499 = vmax.xlane.f32.xlu0 %v498
        %v500 = vpop.xlane.xlu0 %499
        %v501 = vsel %vm497, %v495, -inf
        %502 = vmax.xlane.f32.xlu0 %v501
        %v503 = vpop.xlane.xlu0 %502
        %v504 = vsub.f32 %v493, %v500
        %v505 = vsub.f32 %v495, %v503
        %v506 = vmul.f32 %v504, 1.442695
        %v507 = vpow.pop %v506
        %v508 = vmul.f32 %v505, 1.442695
        %v509 = vpow.pop %v508
        %v510 = vsel %vm497, %v507, 0.0
        %511 = vadd.xlane.f32.xlu0 %v510
        %v512 = vpop.xlane.xlu0 %511
        %v513 = vsel %vm497, %v509, 0.0
        %514 = vadd.xlane.f32.xlu0 %v513
        %v515 = vpop.xlane.xlu0 %514
        %v516 = vrcp.pop %v512
        %v517 = vrcp.pop %v515
        %v518 = vmul.f32 %v507, %v516
        %v519 = vmul.f32 %v509, %v517
        %v520 = vpack.c.bf16 %v518, %v518
        %v521 = vpack.c.bf16 %v519, %v519
        %v524 = vunpack.c.l.b16 %v520
        %v525 = vunpack.c.l.b16 %v521
        %v526 = vpack.c.b16 %v525, %v524
        %v529 = vunpack.c.l.b16 %v463
        %v530 = vunpack.c.l.b16 %v465
        %v531 = vpack.c.b16 %v530, %v529
        %v534 = vsel %vm497, %v526, 0
        %536 = vmatpush.bf16.msra.mxu0 0
        %537 = vmatpush.bf16.msra.mxu0 0
        %538 = vmatpush.bf16.msra.mxu0 0
        %539 = vmatpush.bf16.msra.mxu0 0
        %540 = vmatpush.bf16.msra.mxu0 0
        %541 = vmatpush.bf16.msra.mxu0 0
        %542 = vmatpush.bf16.msra.mxu0 0
        %543 = vmatpush.bf16.msra.mxu0 %v531
        %544 = vmatmul.bf16.gmra.mxu0 %v534
        %v545 = vpop.f32.mrf.mxu0
        %v546 = vadd.f32 0.0, %v545
        %v547 = vpop.f32.mrf.mxu0
        %v548 = vadd.f32 0.0, %v547
        %549 = vdwg.mxu0
        %v550 = vld [vmem:[#allocation7] sm:$0xf]
        %v551 = vld [vmem:[#allocation7 + $0x4] sm:$0xf]
        %v552 = vld [vmem:[#allocation7 + $0x8] sm:$0xf]
        %v553 = vld [vmem:[#allocation7 + $0xc] sm:$0xf]
        %v554 = vpack.c.bf16 %v546, %v546
        %v555 = vpack.c.bf16 %v548, %v548
        %556 = vrot.lane.b32.xlu0 %v462, 96
        %v557 = vpop.permute.xlu0 %556
        %558 = vrot.lane.b32.xlu0 %v464, 96
        %v559 = vpop.permute.xlu0 %558
        %v560 = vrot.slane %v557, 4
        %v561 = vrot.slane %v559, 4
        %562 = vrot.lane.b32.xlu0 %v472, 96
        %v563 = vpop.permute.xlu0 %562
        %v564 = vunpack.c.l.b16 %v560
        %v565 = vunpack.c.l.b16 %v561
        %v566 = vpack.c.b16 %v565, %v564
        %v568 = vsel %vm476, %v563, 0
        %v571 = vsel %vm476, %v566, 0
        %573 = vmatpush.bf16.xpose.msra.mxu0 0
        %574 = vmatpush.bf16.xpose.msra.mxu0 0
        %575 = vmatpush.bf16.xpose.msra.mxu0 0
        %576 = vmatpush.bf16.xpose.msra.mxu0 0
        %577 = vmatpush.bf16.xpose.msra.mxu0 0
        %578 = vmatpush.bf16.xpose.msra.mxu0 0
        %579 = vmatpush.bf16.xpose.msra.mxu0 0
        %580 = vmatpush.bf16.xpose.msra.mxu0 %v571
        %581 = vmatmul.bf16.gmra.mxu0 %v568
        %v582 = vpop.f32.mrf.mxu0
        %v583 = vadd.f32 0.0, %v582
        %v584 = vpop.f32.mrf.mxu0
        %v585 = vadd.f32 0.0, %v584
        %586 = vdwg.mxu0
        %v587 = vsel %vm497, %v583, -inf
        %588 = vmax.xlane.f32.xlu0 %v587
        %v589 = vpop.xlane.xlu0 %588
        %v590 = vsel %vm497, %v585, -inf
        %591 = vmax.xlane.f32.xlu0 %v590
        %v592 = vpop.xlane.xlu0 %591
        %v593 = vsub.f32 %v583, %v589
        %v594 = vsub.f32 %v585, %v592
        %v595 = vmul.f32 %v593, 1.442695
        %v596 = vpow.pop %v595
        %v597 = vmul.f32 %v594, 1.442695
        %v598 = vpow.pop %v597
        %v599 = vsel %vm497, %v596, 0.0
        %600 = vadd.xlane.f32.xlu0 %v599
        %v601 = vpop.xlane.xlu0 %600
        %v602 = vsel %vm497, %v598, 0.0
        %603 = vadd.xlane.f32.xlu0 %v602
        %v604 = vpop.xlane.xlu0 %603
        %v605 = vrcp.pop %v601
        %v606 = vrcp.pop %v604
        %v607 = vmul.f32 %v596, %v605
        %v608 = vmul.f32 %v598, %v606
        %v609 = vpack.c.bf16 %v607, %v607
        %v610 = vpack.c.bf16 %v608, %v608
        %v613 = vunpack.c.l.b16 %v609
        %v614 = vunpack.c.l.b16 %v610
        %v615 = vpack.c.b16 %v614, %v613
        %616 = vrot.lane.b32.xlu0 %v531, 96
        %v617 = vpop.permute.xlu0 %616
        %v620 = vsel %vm497, %v615, 0
        %622 = vmatpush.bf16.msra.mxu0 0
        %623 = vmatpush.bf16.msra.mxu0 0
        %624 = vmatpush.bf16.msra.mxu0 0
        %625 = vmatpush.bf16.msra.mxu0 0
        %626 = vmatpush.bf16.msra.mxu0 0
        %627 = vmatpush.bf16.msra.mxu0 0
        %628 = vmatpush.bf16.msra.mxu0 0
        %629 = vmatpush.bf16.msra.mxu0 %v617
        %630 = vmatmul.bf16.gmra.mxu0 %v620
        %v631 = vpop.f32.mrf.mxu0
        %v632 = vadd.f32 0.0, %v631
        %v633 = vpop.f32.mrf.mxu0
        %v634 = vadd.f32 0.0, %v633
        %635 = vdwg.mxu0
        %v636 = vld [vmem:[#allocation7 + $0x10] sm:$0xf]
        %v637 = vld [vmem:[#allocation7 + $0x14] sm:$0xf]
        %v638 = vld [vmem:[#allocation7 + $0x18] sm:$0xf]
        %v639 = vld [vmem:[#allocation7 + $0x1c] sm:$0xf]
        %v640 = vpack.c.bf16 %v632, %v632
        %v641 = vpack.c.bf16 %v634, %v634
        %v644 = vunpack.c.l.b16 %v640
        %v645 = vunpack.c.l.b16 %v641
        %v646 = vpack.c.b16 %v645, %v644
        %v651 = vunpack.c.l.b16 %v636
        %v652 = vunpack.c.l.b16 %v637
        %v653 = vunpack.c.l.b16 %v638
        %v654 = vunpack.c.l.b16 %v639
        %v655 = vpack.c.b16 %v652, %v651
        %v656 = vpack.c.b16 %v654, %v653
        %v660 = vsel %vm476, %v646, 0
        %662 = vmatpush.bf16.msra.mxu0 0
        %663 = vmatpush.bf16.msra.mxu0 0
        %664 = vmatpush.bf16.msra.mxu0 0
        %665 = vmatpush.bf16.msra.mxu0 0
        %666 = vmatpush.bf16.msra.mxu0 0
        %667 = vmatpush.bf16.msra.mxu0 0
        %668 = vmatpush.bf16.msra.mxu0 %v656
        %669 = vmatpush.bf16.msra.mxu0 %v655
        %670 = vmatmul.bf16.gmra.mxu0 %v660
        %v671 = vpop.f32.mrf.mxu0
        %v672 = vadd.f32 0.0, %v671
        %v673 = vpop.f32.mrf.mxu0
        %v674 = vadd.f32 0.0, %v673
        %675 = vdwg.mxu0
        %v678 = vunpack.c.l.b16 %v554
        %v679 = vunpack.c.l.b16 %v555
        %v680 = vpack.c.b16 %v679, %v678
        %v685 = vunpack.c.l.b16 %v550
        %v686 = vunpack.c.l.b16 %v551
        %v687 = vunpack.c.l.b16 %v552
        %v688 = vunpack.c.l.b16 %v553
        %v689 = vpack.c.b16 %v686, %v685
        %v690 = vpack.c.b16 %v688, %v687
        %v694 = vsel %vm476, %v680, 0
        %696 = vmatpush.bf16.msra.mxu0 0
        %697 = vmatpush.bf16.msra.mxu0 0
        %698 = vmatpush.bf16.msra.mxu0 0
        %699 = vmatpush.bf16.msra.mxu0 0
        %700 = vmatpush.bf16.msra.mxu0 0
        %701 = vmatpush.bf16.msra.mxu0 0
        %702 = vmatpush.bf16.msra.mxu0 %v690
        %703 = vmatpush.bf16.msra.mxu0 %v689
        %704 = vmatmul.bf16.gmra.mxu0 %v694
        %v705 = vpop.f32.mrf.mxu0
        %v706 = vadd.f32 %v672, %v705
        %v707 = vpop.f32.mrf.mxu0
        %v708 = vadd.f32 %v674, %v707
        %709 = vdwg.mxu0
        %710 = vrot.lane.b32.xlu0 %v462, 64
        %v711 = vpop.permute.xlu0 %710
        %712 = vrot.lane.b32.xlu0 %v464, 64
        %v713 = vpop.permute.xlu0 %712
        %v714 = vrot.slane %v711, 4
        %v715 = vrot.slane %v713, 4
        %716 = vrot.lane.b32.xlu0 %v472, 64
        %v717 = vpop.permute.xlu0 %716
        %v718 = vunpack.c.l.b16 %v714
        %v719 = vunpack.c.l.b16 %v715
        %v720 = vpack.c.b16 %v719, %v718
        %v722 = vsel %vm476, %v717, 0
        %v725 = vsel %vm476, %v720, 0
        %727 = vmatpush.bf16.xpose.msra.mxu0 0
        %728 = vmatpush.bf16.xpose.msra.mxu0 0
        %729 = vmatpush.bf16.xpose.msra.mxu0 0
        %730 = vmatpush.bf16.xpose.msra.mxu0 0
        %731 = vmatpush.bf16.xpose.msra.mxu0 0
        %732 = vmatpush.bf16.xpose.msra.mxu0 0
        %733 = vmatpush.bf16.xpose.msra.mxu0 0
        %734 = vmatpush.bf16.xpose.msra.mxu0 %v725
        %735 = vmatmul.bf16.gmra.mxu0 %v722
        %v736 = vpop.f32.mrf.mxu0
        %v737 = vadd.f32 0.0, %v736
        %v738 = vpop.f32.mrf.mxu0
        %v739 = vadd.f32 0.0, %v738
        %740 = vdwg.mxu0
        %v741 = vsel %vm497, %v737, -inf
        %742 = vmax.xlane.f32.xlu0 %v741
        %v743 = vpop.xlane.xlu0 %742
        %v744 = vsel %vm497, %v739, -inf
        %745 = vmax.xlane.f32.xlu0 %v744
        %v746 = vpop.xlane.xlu0 %745
        %v747 = vsub.f32 %v737, %v743
        %v748 = vsub.f32 %v739, %v746
        %v749 = vmul.f32 %v747, 1.442695
        %v750 = vpow.pop %v749
        %v751 = vmul.f32 %v748, 1.442695
        %v752 = vpow.pop %v751
        %v753 = vsel %vm497, %v750, 0.0
        %754 = vadd.xlane.f32.xlu0 %v753
        %v755 = vpop.xlane.xlu0 %754
        %v756 = vsel %vm497, %v752, 0.0
        %757 = vadd.xlane.f32.xlu0 %v756
        %v758 = vpop.xlane.xlu0 %757
        %v759 = vrcp.pop %v755
        %v760 = vrcp.pop %v758
        %v761 = vmul.f32 %v750, %v759
        %v762 = vmul.f32 %v752, %v760
        %v763 = vpack.c.bf16 %v761, %v761
        %v764 = vpack.c.bf16 %v762, %v762
        %v767 = vunpack.c.l.b16 %v763
        %v768 = vunpack.c.l.b16 %v764
        %v769 = vpack.c.b16 %v768, %v767
        %770 = vrot.lane.b32.xlu0 %v531, 64
        %v771 = vpop.permute.xlu0 %770
        %v774 = vsel %vm497, %v769, 0
        %776 = vmatpush.bf16.msra.mxu0 0
        %777 = vmatpush.bf16.msra.mxu0 0
        %778 = vmatpush.bf16.msra.mxu0 0
        %779 = vmatpush.bf16.msra.mxu0 0
        %780 = vmatpush.bf16.msra.mxu0 0
        %781 = vmatpush.bf16.msra.mxu0 0
        %782 = vmatpush.bf16.msra.mxu0 0
        %783 = vmatpush.bf16.msra.mxu0 %v771
        %784 = vmatmul.bf16.gmra.mxu0 %v774
        %v785 = vpop.f32.mrf.mxu0
        %v786 = vadd.f32 0.0, %v785
        %v787 = vpop.f32.mrf.mxu0
        %v788 = vadd.f32 0.0, %v787
        %789 = vdwg.mxu0
        %v790 = vld [vmem:[#allocation7 + $0x20] sm:$0xf]
        %v791 = vld [vmem:[#allocation7 + $0x24] sm:$0xf]
        %v792 = vld [vmem:[#allocation7 + $0x28] sm:$0xf]
        %v793 = vld [vmem:[#allocation7 + $0x2c] sm:$0xf]
        %v794 = vpack.c.bf16 %v786, %v786
        %v795 = vpack.c.bf16 %v788, %v788
        %v798 = vunpack.c.l.b16 %v794
        %v799 = vunpack.c.l.b16 %v795
        %v800 = vpack.c.b16 %v799, %v798
        %v805 = vunpack.c.l.b16 %v790
        %v806 = vunpack.c.l.b16 %v791
        %v807 = vunpack.c.l.b16 %v792
        %v808 = vunpack.c.l.b16 %v793
        %v809 = vpack.c.b16 %v806, %v805
        %v810 = vpack.c.b16 %v808, %v807
        %v814 = vsel %vm476, %v800, 0
        %816 = vmatpush.bf16.msra.mxu0 0
        %817 = vmatpush.bf16.msra.mxu0 0
        %818 = vmatpush.bf16.msra.mxu0 0
        %819 = vmatpush.bf16.msra.mxu0 0
        %820 = vmatpush.bf16.msra.mxu0 0
        %821 = vmatpush.bf16.msra.mxu0 0
        %822 = vmatpush.bf16.msra.mxu0 %v810
        %823 = vmatpush.bf16.msra.mxu0 %v809
        %824 = vmatmul.bf16.gmra.mxu0 %v814
        %v825 = vpop.f32.mrf.mxu0
        %v826 = vadd.f32 0.0, %v825
        %v827 = vpop.f32.mrf.mxu0
        %v828 = vadd.f32 0.0, %v827
        %829 = vdwg.mxu0
        %v830 = vadd.f32 %v706, %v826
        %v831 = vadd.f32 %v708, %v828
        %832 = vrot.lane.b32.xlu0 %v462, 32
        %v833 = vpop.permute.xlu0 %832
        %834 = vrot.lane.b32.xlu0 %v464, 32
        %v835 = vpop.permute.xlu0 %834
        %v836 = vrot.slane %v833, 4
        %v837 = vrot.slane %v835, 4
        %838 = vrot.lane.b32.xlu0 %v472, 32
        %v839 = vpop.permute.xlu0 %838
        %v840 = vunpack.c.l.b16 %v836
        %v841 = vunpack.c.l.b16 %v837
        %v842 = vpack.c.b16 %v841, %v840
        %v844 = vsel %vm476, %v839, 0
        %v847 = vsel %vm476, %v842, 0
        %849 = vmatpush.bf16.xpose.msra.mxu0 0
        %850 = vmatpush.bf16.xpose.msra.mxu0 0
        %851 = vmatpush.bf16.xpose.msra.mxu0 0
        %852 = vmatpush.bf16.xpose.msra.mxu0 0
        %853 = vmatpush.bf16.xpose.msra.mxu0 0
        %854 = vmatpush.bf16.xpose.msra.mxu0 0
        %855 = vmatpush.bf16.xpose.msra.mxu0 0
        %856 = vmatpush.bf16.xpose.msra.mxu0 %v847
        %857 = vmatmul.bf16.gmra.mxu0 %v844
        %v858 = vpop.f32.mrf.mxu0
        %v859 = vadd.f32 0.0, %v858
        %v860 = vpop.f32.mrf.mxu0
        %v861 = vadd.f32 0.0, %v860
        %862 = vdwg.mxu0
        %v863 = vsel %vm497, %v859, -inf
        %864 = vmax.xlane.f32.xlu0 %v863
        %v865 = vpop.xlane.xlu0 %864
        %v866 = vsel %vm497, %v861, -inf
        %867 = vmax.xlane.f32.xlu0 %v866
        %v868 = vpop.xlane.xlu0 %867
        %v869 = vsub.f32 %v859, %v865
        %v870 = vsub.f32 %v861, %v868
        %v871 = vmul.f32 %v869, 1.442695
        %v872 = vpow.pop %v871
        %v873 = vmul.f32 %v870, 1.442695
        %v874 = vpow.pop %v873
        %v875 = vsel %vm497, %v872, 0.0
        %876 = vadd.xlane.f32.xlu0 %v875
        %v877 = vpop.xlane.xlu0 %876
        %v878 = vsel %vm497, %v874, 0.0
        %879 = vadd.xlane.f32.xlu0 %v878
        %v880 = vpop.xlane.xlu0 %879
        %v881 = vrcp.pop %v877
        %v882 = vrcp.pop %v880
        %v883 = vmul.f32 %v872, %v881
        %v884 = vmul.f32 %v874, %v882
        %v885 = vpack.c.bf16 %v883, %v883
        %v886 = vpack.c.bf16 %v884, %v884
        %v889 = vunpack.c.l.b16 %v885
        %v890 = vunpack.c.l.b16 %v886
        %v891 = vpack.c.b16 %v890, %v889
        %892 = vrot.lane.b32.xlu0 %v531, 32
        %v893 = vpop.permute.xlu0 %892
        %v896 = vsel %vm497, %v891, 0
        %898 = vmatpush.bf16.msra.mxu0 0
        %899 = vmatpush.bf16.msra.mxu0 0
        %900 = vmatpush.bf16.msra.mxu0 0
        %901 = vmatpush.bf16.msra.mxu0 0
        %902 = vmatpush.bf16.msra.mxu0 0
        %903 = vmatpush.bf16.msra.mxu0 0
        %904 = vmatpush.bf16.msra.mxu0 0
        %905 = vmatpush.bf16.msra.mxu0 %v893
        %906 = vmatmul.bf16.gmra.mxu0 %v896
        %v907 = vpop.f32.mrf.mxu0
        %v908 = vadd.f32 0.0, %v907
        %v909 = vpop.f32.mrf.mxu0
        %v910 = vadd.f32 0.0, %v909
        %911 = vdwg.mxu0
        %v912 = vld [vmem:[#allocation7 + $0x30] sm:$0xf]
        %v913 = vld [vmem:[#allocation7 + $0x34] sm:$0xf]
        %v914 = vld [vmem:[#allocation7 + $0x38] sm:$0xf]
        %v915 = vld [vmem:[#allocation7 + $0x3c] sm:$0xf]
        %v916 = vpack.c.bf16 %v908, %v908
        %v917 = vpack.c.bf16 %v910, %v910
        %v920 = vunpack.c.l.b16 %v916
        %v921 = vunpack.c.l.b16 %v917
        %v922 = vpack.c.b16 %v921, %v920
        %v927 = vunpack.c.l.b16 %v912
        %v928 = vunpack.c.l.b16 %v913
        %v929 = vunpack.c.l.b16 %v914
        %v930 = vunpack.c.l.b16 %v915
        %v931 = vpack.c.b16 %v928, %v927
        %v932 = vpack.c.b16 %v930, %v929
        %v936 = vsel %vm476, %v922, 0
        %938 = vmatpush.bf16.msra.mxu0 0
        %939 = vmatpush.bf16.msra.mxu0 0
        %940 = vmatpush.bf16.msra.mxu0 0
        %941 = vmatpush.bf16.msra.mxu0 0
        %942 = vmatpush.bf16.msra.mxu0 0
        %943 = vmatpush.bf16.msra.mxu0 0
        %944 = vmatpush.bf16.msra.mxu0 %v932
        %945 = vmatpush.bf16.msra.mxu0 %v931
        %946 = vmatmul.bf16.gmra.mxu0 %v936
        %v947 = vpop.f32.mrf.mxu0
        %v948 = vadd.f32 0.0, %v947
        %v949 = vpop.f32.mrf.mxu0
        %v950 = vadd.f32 0.0, %v949
        %951 = vdwg.mxu0
        %v952 = vadd.f32 %v830, %v948
        %v953 = vadd.f32 %v831, %v950
        %v954 = vld [vmem:[%s3] sm:$0x1]
        %v956 = vperm.slane %v954, 0
        %v958 = vadd.f32 %v952, %v956
        %v959 = vadd.f32 %v953, %v956
        %960 = vst [vmem:[%s250] sm:$0xff] %v958
        %961 = vst [vmem:[%s250 + $0x8] sm:$0xff] %v959
        %s962 = sand.u32 %s119, 1
        %s963 = scalar_lea.sflag [#allocation4], %s962
        %s964 = sand.u32 %s119, 1
        %s965 = smul.addr %s964, 16
        %s966 = scalar_lea.vmem [#allocation8], %s965
        // Predicated region
        $region49: #{tpu_custom_call.1} parent=35 // pred_check
          %p967 = pneg %p129
        $region50: #{tpu_custom_call.1} parent=35 // pred_check_branch
          %969 = sbr.rel (%p967) target = $region52
        $region51: #{tpu_custom_call.1} parent=35 // pred_region
          %971 = vsyncadd %s963, 0
          %s972 = smul.addr %s22, 2
          %s973 = smul.addr %s972, 8
          %s974 = scalar_lea.hbm %s4, %s973
          %s975 = sshll.u32 %s966, 4
          %s976 = int_to_ptr.vmem [resolvable:$true] %s975
          %s977 = sshll.u32 %s974, 4
          %s978 = int_to_ptr.hbm [resolvable:$true] %s977
          %983 = dma.vmem_to_hbm [thread:$0]  %s976, 256, %s978, %s963, 128, 128, 8
        $region52: #{tpu_custom_call.1} parent=35 // pred_fallthru
          _
      $region36: #{tpu_custom_call.1} parent=5 // pred_fallthru
        _
      %p984 = scmp.le.s32.totalorder 2, %s17
      // Predicated region
      $region53: #{tpu_custom_call.1} parent=5 // pred_check
        %p985 = pneg %p984
      $region54: #{tpu_custom_call.1} parent=5 // pred_check_branch
        %987 = sbr.rel (%p985) target = $region56
      $region55: #{tpu_custom_call.1} parent=5 // pred_region
        %s988 = ssub.s32 %s17, 2
        // Predicated region
        $region57: #{tpu_custom_call.1} parent=55 // pred_check
          %p989 = pneg %p135
        $region58: #{tpu_custom_call.1} parent=55 // pred_check_branch
          %991 = sbr.rel (%p989) target = $region60
        $region59: #{tpu_custom_call.1} parent=55 // pred_region
          %s992 = sand.u32 %s120, 1
          %s993 = scalar_lea.sflag [#allocation4], %s992
          %s994 = sand.u32 %s120, 1
          %s995 = smul.addr %s994, 16
          %s996 = scalar_lea.vmem [#allocation8], %s995
          %998 = dma.done %s993, 256
        $region60: #{tpu_custom_call.1} parent=55 // pred_fallthru
          _
      $region56: #{tpu_custom_call.1} parent=5 // pred_fallthru
        _
    $region6: #{tpu_custom_call.1} parent=1 // loop_footer
      %s21 = sadd.s32 1, %s17
    $region7: #{tpu_custom_call.1} parent=1 // loop_footer_branch
      %16 = sbr.rel target = $region3
    $region8: #{tpu_custom_call.1} parent=1 // loop_exit
      _
    %999 = vsyncpa [#allocation3], 1
    %s1000 = scalar_lea.sflag [#allocation3], 1
    %1001 = vsyncpa %s1000, 1
    %1002 = vsyncpa [#allocation6], 1
    %1003 = vsyncpa [#allocation4], 1
    %s1004 = scalar_lea.sflag [#allocation4], 1
    %1005 = vsyncpa %s1004, 1

</llo_original>
